<compile_context>
chip_gen: v6e
topology: v6e:2x2x1
jax: 0.10.0
libtpu: 0.0.40
codegen_flags: <defaults>
</compile_context>

<pallas_src>
import jax
import jax.numpy as jnp
from jax.experimental import pallas as pl
from jax.experimental.pallas import tpu as pltpu


def _gelu_tanh(h):
    # GELU with tanh approximation, matching torch.nn.GELU(approximate='tanh')
    c = 0.7978845608028654  # sqrt(2/pi)
    return 0.5 * h * (1.0 + jnp.tanh(c * (h + 0.044715 * h * h * h)))


def _round_up(x, m):
    return ((x + m - 1) // m) * m


def mlp_kernel(x_ref, wfc_ref, bfc_ref, wproj_ref, bproj_ref, o_ref):
    # x tile: (tm, C) bf16; weights resident in VMEM (bf16) across the grid.
    # Both matmuls accumulate in f32 on the MXU; bias add + GELU run in f32.
    h = jnp.dot(x_ref[...], wfc_ref[...],
                preferred_element_type=jnp.float32) + bfc_ref[...]
    g = _gelu_tanh(h)  # f32 elementwise (VPU/EUP)
    out = jnp.dot(g.astype(jnp.bfloat16), wproj_ref[...],
                  preferred_element_type=jnp.float32) + bproj_ref[...]
    o_ref[...] = out.astype(o_ref.dtype)


def mlp_forward(x, w_fc, b_fc, w_proj, b_proj, *, tm=256):
    """x: (B, T, C) -> (B, T, C). Fused MLP forward in one Pallas kernel."""
    B, T, C = x.shape
    H = w_fc.shape[1]
    M = B * T

    # Row tile: big enough to feed the MXU (>=128 at real sizes), clipped for
    # tiny inputs; pad the row count to a multiple of tm (no divisibility
    # assert). Padded rows are garbage-but-finite and sliced off at the end.
    tm = min(tm, _round_up(M, 8))
    Mp = _round_up(M, tm)

    x2d = x.reshape(M, C)
    if Mp != M:
        x2d = jnp.pad(x2d, ((0, Mp - M), (0, 0)))

    # bf16 MXU inputs; f32 accumulation stays inside the kernel. Biases in f32.
    x_bf16 = x2d.astype(jnp.bfloat16)
    wfc_bf16 = w_fc.astype(jnp.bfloat16)
    wproj_bf16 = w_proj.astype(jnp.bfloat16)
    b_fc32 = b_fc.astype(jnp.float32)
    b_proj32 = b_proj.astype(jnp.float32)

    # Weight / bias blocks never change across the grid -> single-buffer them.
    resident = dict(pipeline_mode=pl.Buffered(1))

    # Explicit VMEM budget: resident bf16 weights + double-buffered row tiles
    # + f32 hidden intermediate, with 2x headroom; clamp to 64 MiB (v7x-safe).
    vmem_bytes = (
        2 * C * H * 2            # w_fc + w_proj in bf16 (single-buffered)
        + (H + C) * 4 * 2        # biases (f32)
        + 2 * tm * C * 2         # x tiles, bf16, double-buffered
        + 2 * tm * C * 4         # out tiles, f32, double-buffered
        + tm * H * (4 + 2)       # f32 hidden + bf16 cast of GELU output
    )
    vmem_bytes = int(min(max(2 * vmem_bytes, 8 << 20), 64 << 20))

    out2d = pl.pallas_call(
        mlp_kernel,
        out_shape=jax.ShapeDtypeStruct((Mp, C), x.dtype),
        grid_spec=pltpu.PrefetchScalarGridSpec(
            num_scalar_prefetch=0,
            grid=(Mp // tm,),
            in_specs=[
                pl.BlockSpec((tm, C), lambda i: (i, 0)),              # x rows
                pl.BlockSpec((C, H), lambda i: (0, 0), **resident),   # w_fc
                pl.BlockSpec((1, H), lambda i: (0, 0), **resident),   # b_fc
                pl.BlockSpec((H, C), lambda i: (0, 0), **resident),   # w_proj
                pl.BlockSpec((1, C), lambda i: (0, 0), **resident),   # b_proj
            ],
            out_specs=pl.BlockSpec((tm, C), lambda i: (i, 0)),
        ),
        compiler_params=pltpu.CompilerParams(
            dimension_semantics=("parallel",),     # megacore-shardable rows
            vmem_limit_bytes=vmem_bytes),
    )(x_bf16, wfc_bf16, b_fc32, wproj_bf16, b_proj32)

    if Mp != M:
        out2d = out2d[:M]
    return out2d.reshape(B, T, C)


def reference_mlp(x, w_fc, b_fc, w_proj, b_proj):
    h = jnp.einsum("btc,ch->bth", x, w_fc) + b_fc[0]
    g = _gelu_tanh(h)
    return jnp.einsum("bth,hc->btc", g, w_proj) + b_proj[0]


if __name__ == "__main__":
    # Small GPT-2 style config: n_embd=32  ->  hidden = 4*32 = 128
    B, T, C = 2, 8, 32
    H = 4 * C

    key = jax.random.PRNGKey(0)
    kx, kwf, kbf, kwp, kbp = jax.random.split(key, 5)

    x = jax.random.normal(kx, (B, T, C), dtype=jnp.float32)
    # Deterministic synthetic params (shapes match nn.Linear, pre-transposed).
    w_fc = jax.random.normal(kwf, (C, H), dtype=jnp.float32) * 0.02
    b_fc = jax.random.normal(kbf, (1, H), dtype=jnp.float32) * 0.02
    w_proj = jax.random.normal(kwp, (H, C), dtype=jnp.float32) * 0.02
    b_proj = jax.random.normal(kbp, (1, C), dtype=jnp.float32) * 0.02

    out = mlp_forward(x, w_fc, b_fc, w_proj, b_proj)
    out = jax.block_until_ready(out)

    # Reference in f32; kernel uses bf16 MXU inputs with f32 accumulation,
    # so compare with a tolerance that covers bf16 input rounding.
    ref = reference_mlp(x, w_fc, b_fc, w_proj, b_proj)
    assert out.shape == (B, T, C)
    assert jnp.allclose(out, ref, atol=1e-2, rtol=1e-2), "mismatch vs reference"

    print("KERNEL_OK")
</pallas_src>

<mosaic_0001>
module attributes {stable_mosaic.version = 11 : i64} {
  func.func @mlp_kernel(%arg0: i32, %arg1: memref<16x32xbf16, #tpu.memory_space<vmem>>, %arg2: memref<32x128xbf16, #tpu.memory_space<vmem>>, %arg3: memref<1x128xf32, #tpu.memory_space<vmem>>, %arg4: memref<128x32xbf16, #tpu.memory_space<vmem>>, %arg5: memref<1x32xf32, #tpu.memory_space<vmem>>, %arg6: memref<16x32xf32, #tpu.memory_space<vmem>>) attributes {dimension_semantics = [#tpu.dimension_semantics<parallel>], iteration_bounds = array<i64: 1>, scalar_prefetch = 0 : i64, scratch_operands = 0 : i64, tpu.core_type = #tpu.core_type<tc>, window_params = [{transform_indices = @transform_0, window_bounds = array<i64: 16, 32>}, {pipeline_mode = #tpu.pipeline_mode<synchronous>, transform_indices = @transform_1, window_bounds = array<i64: 32, 128>}, {pipeline_mode = #tpu.pipeline_mode<synchronous>, transform_indices = @transform_2, window_bounds = array<i64: 1, 128>}, {pipeline_mode = #tpu.pipeline_mode<synchronous>, transform_indices = @transform_3, window_bounds = array<i64: 128, 32>}, {pipeline_mode = #tpu.pipeline_mode<synchronous>, transform_indices = @transform_4, window_bounds = array<i64: 1, 32>}, {transform_indices = @transform_5, window_bounds = array<i64: 16, 32>}]} {
    %c0 = arith.constant 0 : index
    %c0_0 = arith.constant 0 : index
    %0 = vector.load %arg1[%c0, %c0_0] : memref<16x32xbf16, #tpu.memory_space<vmem>>, vector<16x32xbf16>
    %c0_1 = arith.constant 0 : index
    %c0_2 = arith.constant 0 : index
    %1 = vector.load %arg2[%c0_1, %c0_2] : memref<32x128xbf16, #tpu.memory_space<vmem>>, vector<32x128xbf16>
    %cst = arith.constant dense<0.000000e+00> : vector<16x128xf32>
    %2 = tpu.matmul %0, %1, %cst {dimension_numbers = #tpu.dot_dimension_numbers<[1], [0], [0], [1], [0, 0, 1, 1], [], []>} : vector<16x32xbf16>, vector<32x128xbf16>, vector<16x128xf32> -> vector<16x128xf32>
    %c0_3 = arith.constant 0 : index
    %c0_4 = arith.constant 0 : index
    %3 = vector.load %arg3[%c0_3, %c0_4] : memref<1x128xf32, #tpu.memory_space<vmem>>, vector<1x128xf32>
    %4 = vector.broadcast %3 : vector<1x128xf32> to vector<16x128xf32>
    %5 = arith.addf %2, %4 : vector<16x128xf32>
    %cst_5 = arith.constant 5.000000e-01 : f32
    %6 = vector.broadcast %cst_5 : f32 to vector<16x128xf32>
    %7 = arith.mulf %6, %5 : vector<16x128xf32>
    %cst_6 = arith.constant 4.471500e-02 : f32
    %8 = vector.broadcast %cst_6 : f32 to vector<16x128xf32>
    %9 = arith.mulf %8, %5 : vector<16x128xf32>
    %10 = arith.mulf %9, %5 : vector<16x128xf32>
    %11 = arith.mulf %10, %5 : vector<16x128xf32>
    %12 = arith.addf %5, %11 : vector<16x128xf32>
    %cst_7 = arith.constant 0.797884583 : f32
    %13 = vector.broadcast %cst_7 : f32 to vector<16x128xf32>
    %14 = arith.mulf %13, %12 : vector<16x128xf32>
    %15 = math.tanh %14 : vector<16x128xf32>
    %cst_8 = arith.constant 1.000000e+00 : f32
    %16 = vector.broadcast %cst_8 : f32 to vector<16x128xf32>
    %17 = arith.addf %16, %15 : vector<16x128xf32>
    %18 = arith.mulf %7, %17 : vector<16x128xf32>
    %19 = arith.truncf %18 : vector<16x128xf32> to vector<16x128xbf16>
    %c0_9 = arith.constant 0 : index
    %c0_10 = arith.constant 0 : index
    %20 = vector.load %arg4[%c0_9, %c0_10] : memref<128x32xbf16, #tpu.memory_space<vmem>>, vector<128x32xbf16>
    %cst_11 = arith.constant dense<0.000000e+00> : vector<16x32xf32>
    %21 = tpu.matmul %19, %20, %cst_11 {dimension_numbers = #tpu.dot_dimension_numbers<[1], [0], [0], [1], [0, 0, 1, 1], [], []>} : vector<16x128xbf16>, vector<128x32xbf16>, vector<16x32xf32> -> vector<16x32xf32>
    %c0_12 = arith.constant 0 : index
    %c0_13 = arith.constant 0 : index
    %22 = vector.load %arg5[%c0_12, %c0_13] : memref<1x32xf32, #tpu.memory_space<vmem>>, vector<1x32xf32>
    %23 = vector.broadcast %22 : vector<1x32xf32> to vector<16x32xf32>
    %24 = arith.addf %21, %23 : vector<16x32xf32>
    %c0_14 = arith.constant 0 : index
    %c0_15 = arith.constant 0 : index
    %25 = vector.load %arg6[%c0_14, %c0_15] : memref<16x32xf32, #tpu.memory_space<vmem>>, vector<16x32xf32>
    tpu.vector_store %arg6[%c0_14, %c0_15], %24 {strides = array<i32>} : memref<16x32xf32, #tpu.memory_space<vmem>>, vector<16x32xf32>,
    return
  }
  func.func @transform_0(%arg0: i32) -> (i32, i32) {
    %c0_i32 = arith.constant 0 : i32
    %c0_i32_0 = arith.constant 0 : i32
    return %arg0, %c0_i32 : i32, i32
  }
  func.func @transform_1(%arg0: i32) -> (i32, i32) {
    %c0_i32 = arith.constant 0 : i32
    %c0_i32_0 = arith.constant 0 : i32
    %c0_i32_1 = arith.constant 0 : i32
    return %c0_i32, %c0_i32_0 : i32, i32
  }
  func.func @transform_2(%arg0: i32) -> (i32, i32) {
    %c0_i32 = arith.constant 0 : i32
    %c0_i32_0 = arith.constant 0 : i32
    %c0_i32_1 = arith.constant 0 : i32
    return %c0_i32, %c0_i32_0 : i32, i32
  }
  func.func @transform_3(%arg0: i32) -> (i32, i32) {
    %c0_i32 = arith.constant 0 : i32
    %c0_i32_0 = arith.constant 0 : i32
    %c0_i32_1 = arith.constant 0 : i32
    return %c0_i32, %c0_i32_0 : i32, i32
  }
  func.func @transform_4(%arg0: i32) -> (i32, i32) {
    %c0_i32 = arith.constant 0 : i32
    %c0_i32_0 = arith.constant 0 : i32
    %c0_i32_1 = arith.constant 0 : i32
    return %c0_i32, %c0_i32_0 : i32, i32
  }
  func.func @transform_5(%arg0: i32) -> (i32, i32) {
    %c0_i32 = arith.constant 0 : i32
    %c0_i32_0 = arith.constant 0 : i32
    return %arg0, %c0_i32 : i32, i32
  }
}

</mosaic_0001>

<llo_original>
// kernel: tpu_custom_call.1
$region0: #{tpu_custom_call.1}
  #allocation0 [shape = 'u32[]', space=smem, size = 0x4, offset = 0x4, fixed_abs, tag = 'smem constant byte address 0x4 - core index']
  #allocation1 [shape = 'u32[144,128]{1,0:T(1,128)}', space=vmem, size = 0x12000, scoped, tag = 'internal scratch']
  %s0 = inlined_call_operand.vmem [shape: bf16[16,32], index: 0, kind: input, shape index: {}]
  %s1 = inlined_call_operand.vmem [shape: bf16[32,128], index: 1, kind: input, shape index: {}]
  %s2 = inlined_call_operand.vmem [shape: f32[1,128], index: 2, kind: input, shape index: {}]
  %s3 = inlined_call_operand.vmem [shape: bf16[128,32], index: 3, kind: input, shape index: {}]
  %s4 = inlined_call_operand.vmem [shape: f32[1,32], index: 4, kind: input, shape index: {}]
  %s5 = inlined_call_operand.hbm [shape: f32[16,32], index: 5, kind: output, shape index: {}]
  %s6 = sld [smem:[#allocation0]]
  $region30: #{tpu_custom_call.1} parent=0
    _
  %s8 = ssub.s32 1, %s6
  %s9 = scalar_select 0, %s8, %s6
  $region1: #{tpu_custom_call.1} parent=0
    #allocation2 [shape = 'u8[8192]{0}', space=vmem, size = 0x2000, scoped, tag = 'output window, operand 0, single buffered']
    #allocation3 [shape = 's32[1]{0}', space=sflag, size = 0x4, scoped, tag = 'scoped memory for tpu_custom_call.1']
    %10 = vsyncpa [#allocation3], 0
    // Predicated region
    $region2: #{tpu_custom_call.1} parent=1 // pred_check
      _
    $region3: #{tpu_custom_call.1} parent=1 // pred_check_branch
      %12 = sbr.rel (0) target = $region5
    $region4: #{tpu_custom_call.1} parent=1 // pred_region
      _
    $region5: #{tpu_custom_call.1} parent=1 // pred_fallthru
      _
    // Predicated region
    $region6: #{tpu_custom_call.1} parent=1 // pred_check
      _
    $region7: #{tpu_custom_call.1} parent=1 // pred_check_branch
      %14 = sbr.rel (0) target = $region9
    $region8: #{tpu_custom_call.1} parent=1 // pred_region
      _
    $region9: #{tpu_custom_call.1} parent=1 // pred_fallthru
      _
    // Predicated region
    $region10: #{tpu_custom_call.1} parent=1 // pred_check
      _
    $region11: #{tpu_custom_call.1} parent=1 // pred_check_branch
      %16 = sbr.rel (0) target = $region13
    $region12: #{tpu_custom_call.1} parent=1 // pred_region
      _
    $region13: #{tpu_custom_call.1} parent=1 // pred_fallthru
      _
    // Predicated region
    $region14: #{tpu_custom_call.1} parent=1 // pred_check
      _
    $region15: #{tpu_custom_call.1} parent=1 // pred_check_branch
      %18 = sbr.rel (0) target = $region17
    $region16: #{tpu_custom_call.1} parent=1 // pred_region
      _
    $region17: #{tpu_custom_call.1} parent=1 // pred_fallthru
      _
    // Predicated region
    $region18: #{tpu_custom_call.1} parent=1 // pred_check
      _
    $region19: #{tpu_custom_call.1} parent=1 // pred_check_branch
      %20 = sbr.rel (0) target = $region21
    $region20: #{tpu_custom_call.1} parent=1 // pred_region
      _
    $region21: #{tpu_custom_call.1} parent=1 // pred_fallthru
      _
    %v22 = vld [vmem:[%s0] sm:$0xf]
    %v23 = vld [vmem:[%s0 + $0x4] sm:$0xf]
    %v24 = vld [vmem:[%s1] sm:$0xf]
    %v25 = vld [vmem:[%s1 + $0x4] sm:$0xf]
    %v26 = vld [vmem:[%s1 + $0x8] sm:$0xf]
    %v27 = vld [vmem:[%s1 + $0xc] sm:$0xf]
    %v28 = vld [vmem:[%s2] sm:$0x1]
    %v30 = vlaneseq
    %v31 = vshrl.u32 %v30, 7
    %v32 = vsub.s32 0, %v31
    %v33 = vrot.slane %v28, %v32
    %v37 = vunpack.c.l.b16 %v22
    %v38 = vunpack.c.l.b16 %v23
    %v39 = vpack.c.b16 %v38, %v37
    %v44 = vunpack.c.l.b16 %v24
    %v45 = vunpack.c.l.b16 %v25
    %v46 = vunpack.c.l.b16 %v26
    %v47 = vunpack.c.l.b16 %v27
    %v48 = vpack.c.b16 %v45, %v44
    %v49 = vpack.c.b16 %v47, %v46
    %vm52 = vcmask 261120
    %v54 = vsel %vm52, %v39, 0
    %56 = vmatprep.subr.bf16.mxu0 0
    %57 = vmatpush1.bf16.msra.mxu0 0
    %58 = vmatprep.subr.bf16.mxu0 0
    %59 = vmatpush1.bf16.msra.mxu0 0
    %60 = vmatprep.subr.bf16.mxu0 0
    %61 = vmatpush1.bf16.msra.mxu0 0
    %62 = vmatprep.subr.bf16.mxu0 0
    %63 = vmatpush1.bf16.msra.mxu0 0
    %64 = vmatprep.subr.bf16.mxu0 0
    %65 = vmatpush1.bf16.msra.mxu0 0
    %66 = vmatprep.subr.bf16.mxu0 0
    %67 = vmatpush1.bf16.msra.mxu0 0
    %68 = vmatprep.subr.bf16.mxu0 0
    %69 = vmatpush1.bf16.msra.mxu0 %v49
    %70 = vmatprep.subr.bf16.mxu0 0
    %71 = vmatpush1.bf16.msra.mxu0 %v48
    %72 = vmatprep.subr.bf16.mxu0 0
    %73 = vmatpush2.bf16.msra.mxu0 0
    %74 = vmatprep.subr.bf16.mxu0 0
    %75 = vmatpush2.bf16.msra.mxu0 0
    %76 = vmatprep.subr.bf16.mxu0 0
    %77 = vmatpush2.bf16.msra.mxu0 0
    %78 = vmatprep.subr.bf16.mxu0 0
    %79 = vmatpush2.bf16.msra.mxu0 0
    %80 = vmatprep.subr.bf16.mxu0 0
    %81 = vmatpush2.bf16.msra.mxu0 0
    %82 = vmatprep.subr.bf16.mxu0 0
    %83 = vmatpush2.bf16.msra.mxu0 0
    %84 = vmatprep.subr.bf16.mxu0 0
    %85 = vmatpush2.bf16.msra.mxu0 0
    %86 = vmatprep.subr.bf16.mxu0 0
    %87 = vmatpush2.bf16.msra.mxu0 0
    %88 = vmatprep.mubr.bf16.mxu0 0
    %89 = vmatmul.mubr.bf16.gmra.mxu0 %v54
    %v90 = vpop.f32.mrf.mxu0
    %v91 = vadd.f32 %v33, %v90
    %v92 = vpop.f32.mrf.mxu0
    %v93 = vpop.f32.mrf.mxu0
    %v94 = vadd.f32 %v33, %v93
    %v95 = vpop.f32.mrf.mxu0
    %96 = vdwg.mxu0
    %v97 = vmul.f32 %v91, 0.5
    %v98 = vmul.f32 %v94, 0.5
    %v99 = vmul.f32 %v91, 0.044715
    %v100 = vmul.f32 %v94, 0.044715
    %v101 = vmul.f32 %v99, %v91
    %v102 = vmul.f32 %v100, %v94
    %v103 = vmul.f32 %v101, %v91
    %v104 = vmul.f32 %v102, %v94
    %v105 = vadd.f32 %v91, %v103
    %v106 = vadd.f32 %v94, %v104
    %v107 = vmul.f32 %v105, 0.7978846
    %v108 = vmul.f32 %v106, 0.7978846
    %v109 = vtanh.pop %v107
    %v110 = vtanh.pop %v108
    %v111 = vadd.f32 %v109, 1.0
    %v112 = vadd.f32 %v110, 1.0
    %v113 = vmul.f32 %v97, %v111
    %v114 = vmul.f32 %v98, %v112
    %v115 = vpack.c.bf16 %v114, %v113
    %v116 = vld [vmem:[%s3] sm:$0xf]
    %v117 = vld [vmem:[%s3 + $0x4] sm:$0xf]
    %v118 = vld [vmem:[%s3 + $0x8] sm:$0xf]
    %v119 = vld [vmem:[%s3 + $0xc] sm:$0xf]
    %v120 = vld [vmem:[%s3 + $0x10] sm:$0xf]
    %v121 = vld [vmem:[%s3 + $0x14] sm:$0xf]
    %v122 = vld [vmem:[%s3 + $0x18] sm:$0xf]
    %v123 = vld [vmem:[%s3 + $0x1c] sm:$0xf]
    %v124 = vld [vmem:[%s3 + $0x20] sm:$0xf]
    %v125 = vld [vmem:[%s3 + $0x24] sm:$0xf]
    %v126 = vld [vmem:[%s3 + $0x28] sm:$0xf]
    %v127 = vld [vmem:[%s3 + $0x2c] sm:$0xf]
    %v128 = vld [vmem:[%s3 + $0x30] sm:$0xf]
    %v129 = vld [vmem:[%s3 + $0x34] sm:$0xf]
    %v130 = vld [vmem:[%s3 + $0x38] sm:$0xf]
    %v131 = vld [vmem:[%s3 + $0x3c] sm:$0xf]
    %v132 = vld [vmem:[%s4] sm:$0x1]
    %v134 = vlaneseq
    %v135 = vshrl.u32 %v134, 7
    %v136 = vsub.s32 0, %v135
    %v137 = vrot.slane %v132, %v136
    %v155 = vunpack.c.l.b16 %v116
    %v156 = vunpack.c.l.b16 %v117
    %v157 = vunpack.c.l.b16 %v118
    %v158 = vunpack.c.l.b16 %v119
    %v159 = vunpack.c.l.b16 %v120
    %v160 = vunpack.c.l.b16 %v121
    %v161 = vunpack.c.l.b16 %v122
    %v162 = vunpack.c.l.b16 %v123
    %v163 = vunpack.c.l.b16 %v124
    %v164 = vunpack.c.l.b16 %v125
    %v165 = vunpack.c.l.b16 %v126
    %v166 = vunpack.c.l.b16 %v127
    %v167 = vunpack.c.l.b16 %v128
    %v168 = vunpack.c.l.b16 %v129
    %v169 = vunpack.c.l.b16 %v130
    %v170 = vunpack.c.l.b16 %v131
    %v171 = vpack.c.b16 %v156, %v155
    %v172 = vpack.c.b16 %v158, %v157
    %v173 = vpack.c.b16 %v160, %v159
    %v174 = vpack.c.b16 %v162, %v161
    %v175 = vpack.c.b16 %v164, %v163
    %v176 = vpack.c.b16 %v166, %v165
    %v177 = vpack.c.b16 %v168, %v167
    %v178 = vpack.c.b16 %v170, %v169
    %187 = vmatprep.subr.bf16.mxu0 0
    %188 = vmatpush1.bf16.msra.mxu0 %v178
    %189 = vmatprep.subr.bf16.mxu0 0
    %190 = vmatpush1.bf16.msra.mxu0 %v177
    %191 = vmatprep.subr.bf16.mxu0 0
    %192 = vmatpush1.bf16.msra.mxu0 %v176
    %193 = vmatprep.subr.bf16.mxu0 0
    %194 = vmatpush1.bf16.msra.mxu0 %v175
    %195 = vmatprep.subr.bf16.mxu0 0
    %196 = vmatpush1.bf16.msra.mxu0 %v174
    %197 = vmatprep.subr.bf16.mxu0 0
    %198 = vmatpush1.bf16.msra.mxu0 %v173
    %199 = vmatprep.subr.bf16.mxu0 0
    %200 = vmatpush1.bf16.msra.mxu0 %v172
    %201 = vmatprep.subr.bf16.mxu0 0
    %202 = vmatpush1.bf16.msra.mxu0 %v171
    %203 = vmatprep.subr.bf16.mxu0 0
    %204 = vmatpush2.bf16.msra.mxu0 0
    %205 = vmatprep.subr.bf16.mxu0 0
    %206 = vmatpush2.bf16.msra.mxu0 0
    %207 = vmatprep.subr.bf16.mxu0 0
    %208 = vmatpush2.bf16.msra.mxu0 0
    %209 = vmatprep.subr.bf16.mxu0 0
    %210 = vmatpush2.bf16.msra.mxu0 0
    %211 = vmatprep.subr.bf16.mxu0 0
    %212 = vmatpush2.bf16.msra.mxu0 0
    %213 = vmatprep.subr.bf16.mxu0 0
    %214 = vmatpush2.bf16.msra.mxu0 0
    %215 = vmatprep.subr.bf16.mxu0 0
    %216 = vmatpush2.bf16.msra.mxu0 0
    %217 = vmatprep.subr.bf16.mxu0 0
    %218 = vmatpush2.bf16.msra.mxu0 0
    %219 = vmatprep.mubr.bf16.mxu0 0
    %220 = vmatmul.mubr.bf16.gmra.mxu0 %v115
    %v221 = vpop.f32.mrf.mxu0
    %v222 = vadd.f32 %v137, %v221
    %v223 = vpop.f32.mrf.mxu0
    %v224 = vpop.f32.mrf.mxu0
    %v225 = vadd.f32 %v137, %v224
    %v226 = vpop.f32.mrf.mxu0
    %227 = vdwg.mxu0
    %228 = vst.msk [vmem:[#allocation2] sm:$0xff] %vm52, %v222
    %229 = vst.msk [vmem:[#allocation2 + $0x8] sm:$0xff] %vm52, %v225
    // Predicated region
    $region22: #{tpu_custom_call.1} parent=1 // pred_check
      _
    $region23: #{tpu_custom_call.1} parent=1 // pred_check_branch
      %231 = sbr.rel (0) target = $region25
    $region24: #{tpu_custom_call.1} parent=1 // pred_region
      %s233 = ssub.s32 256, 256
      %234 = vsyncadd [#allocation3], %s233
      %s235 = sshll.u32 [#allocation2], 4
      %s236 = int_to_ptr.vmem [resolvable:$true] %s235
      %241 = dma.vmem_to_hbm [thread:$0]  %s236, 256, %s5, [#allocation3], 128, 128, 8
    $region25: #{tpu_custom_call.1} parent=1 // pred_fallthru
      _
    // Predicated region
    $region26: #{tpu_custom_call.1} parent=1 // pred_check
      _
    $region27: #{tpu_custom_call.1} parent=1 // pred_check_branch
      %243 = sbr.rel (0) target = $region29
    $region28: #{tpu_custom_call.1} parent=1 // pred_region
      %244 = dma.done [#allocation3], 256
    $region29: #{tpu_custom_call.1} parent=1 // pred_fallthru
      _
    %245 = vsyncpa [#allocation3], 1

</llo_original>
